<compile_context>
chip_gen: v7x
topology: tpu7x:2x2x1
jax: 0.10.0
libtpu: 0.0.40
codegen_flags: <defaults>
</compile_context>

<pallas_src>
import functools

import jax
import jax.numpy as jnp
from jax.experimental import pallas as pl
from jax.experimental.pallas import tpu as pltpu

_MAX_TB = 2048     # max batch-tile width (lanes); multiple of 128


def _round_up(x, m):
    return ((x + m - 1) // m) * m


def _choose_tb(b):
    """Batch tile (lane) width: full extent for tiny batches, otherwise a
    multiple of 128 with at least two grid steps (feeds both v7x TCs)."""
    if b <= 128:
        return b
    return min(_MAX_TB, _round_up((b + 1) // 2, 128))


def _actor_kernel(xt_ref, w1_ref, w2_ref, w3_ref, out_ref):
    # xt_ref : [n_input, TB]           state, batch on the lane axis
    # w1_ref : [F, n_input + 1]        last column = b1
    # w2_ref : [F, F + 1]              last column = b2
    # w3_ref : [n_out_pad8, F + 1]     last column = b3 (zero rows past n_output)
    # out_ref: [n_out_pad8, TB]
    xt = xt_ref[...]
    if xt.dtype != jnp.float32:        # .float() on the VPU; no-op if already f32
        xt = xt.astype(jnp.float32)
    n_input = xt.shape[0]
    f = w2_ref.shape[0]

    # ---- layer 1 on the VPU: two independent FMA chains (ILP), then combine.
    w1 = w1_ref[...]
    b1 = w1[:, n_input:n_input + 1]                      # [F, 1]
    partials = []
    for k in range(0, n_input, 2):                       # tiny static unroll
        p = w1[:, k:k + 1] * xt[k:k + 1, :]
        if k + 1 < n_input:
            p = p + w1[:, k + 1:k + 2] * xt[k + 1:k + 2, :]
        partials.append(p)
    acc = partials[0]
    for p in partials[1:]:
        acc = acc + p
    h1 = jnp.maximum(acc + b1, 0.0)                      # [F, TB]

    # ---- layer 2 on the MXU ----
    h2 = (jnp.dot(w2_ref[:, :f], h1, preferred_element_type=jnp.float32)
          + w2_ref[:, f:f + 1])
    h2 = jnp.maximum(h2, 0.0)                            # [F, TB]

    # ---- layer 3 on the MXU; sublane-padded (NOT lane-padded) output ----
    out_ref[...] = (
        jnp.dot(w3_ref[:, :f], h2, preferred_element_type=jnp.float32)
        + w3_ref[:, f:f + 1]
    ).astype(out_ref.dtype)


@functools.partial(jax.jit, static_argnames=("n_output",))
def actor_forward(state, w1a, w2a, w3a, *, n_output):
    """Pallas equivalent of ActorNetwork.forward.

    state: [B, 1, n_input]; (w1a, w2a, w3a) from pack_actor_params.
    Returns [B, n_output] float32.
    """
    x = jnp.squeeze(state, axis=1)        # [B, n_input]
    xt = x.T                              # [n_input, B]: layout plumbing, tiny
    n_input, b = xt.shape
    n_out_pad = w3a.shape[0]

    tb = _choose_tb(b)
    grid = (pl.cdiv(b, tb),)

    out_t = pl.pallas_call(
        _actor_kernel,
        out_shape=jax.ShapeDtypeStruct((n_out_pad, b), jnp.float32),
        grid=grid,
        in_specs=[
            pl.BlockSpec((n_input, tb), lambda i: (0, i)),   # lane-dense x tile
            # weights (+ folded biases): whole array, VMEM-resident across tiles
            pl.BlockSpec(w1a.shape, lambda i: (0, 0)),
            pl.BlockSpec(w2a.shape, lambda i: (0, 0)),
            pl.BlockSpec(w3a.shape, lambda i: (0, 0)),
        ],
        out_specs=pl.BlockSpec((n_out_pad, tb), lambda i: (0, i)),
        compiler_params=pltpu.CompilerParams(
            dimension_semantics=("parallel",)),   # batch tiles shard across TCs
    )(xt, w1a, w2a, w3a)

    # Tiny: n_out_pad (8) x B floats, not a 128-lane padded slab.
    return out_t[:n_output, :].T


def pack_actor_params(w1, b1, w2, b2, w3, b3):
    """Fold each bias into its weight as a trailing column; sublane-pad layer 3.

    w*: torch nn.Linear layout [out_features, in_features]; b*: [out_features].
    Done once, outside the per-step forward call.
    """
    def fold(w, bvec):
        return jnp.concatenate([w, jnp.reshape(bvec, (-1, 1))], axis=1)

    w1a = fold(w1, b1)                                   # [F, n_input+1]
    w2a = fold(w2, b2)                                   # [F, F+1]
    w3a = fold(w3, b3)                                   # [n_output, F+1]
    pad = _round_up(w3a.shape[0], 8) - w3a.shape[0]
    if pad > 0:
        w3a = jnp.pad(w3a, ((0, pad), (0, 0)))           # [n_out_pad8, F+1]
    return w1a, w2a, w3a


def _xavier_uniform(key, fan_out, fan_in, gain):
    # torch.nn.init.xavier_uniform_ semantics; torch weight layout [out, in].
    limit = gain * (6.0 / (fan_in + fan_out)) ** 0.5
    return jax.random.uniform(key, (fan_out, fan_in), jnp.float32, -limit, limit)


def _linear_bias(key, fan_in, fan_out):
    # torch default Linear bias init: U(-1/sqrt(fan_in), 1/sqrt(fan_in)).
    bound = 1.0 / (fan_in ** 0.5)
    return jax.random.uniform(key, (fan_out,), jnp.float32, -bound, bound)


def init_actor_params(key, n_input, n_features, n_output):
    ks = jax.random.split(key, 6)
    relu_gain = 2.0 ** 0.5       # nn.init.calculate_gain('relu')
    w1 = _xavier_uniform(ks[0], n_features, n_input, relu_gain)     # [F, n_in]
    b1 = _linear_bias(ks[1], n_input, n_features)
    w2 = _xavier_uniform(ks[2], n_features, n_features, relu_gain)  # [F, F]
    b2 = _linear_bias(ks[3], n_features, n_features)
    w3 = _xavier_uniform(ks[4], n_output, n_features, 1.0)          # [n_out, F]
    b3 = _linear_bias(ks[5], n_features, n_output)
    return w1, b1, w2, b2, w3, b3


if __name__ == "__main__":
    key = jax.random.PRNGKey(0)
    k_params, k_state = jax.random.split(key)

    # Small shapes consistent with an actor network:
    #   input_shape = (4,), output_shape = (2,), n_features = 32, batch = 8
    batch, n_input, n_features, n_output = 8, 4, 32, 2

    w1, b1, w2, b2, w3, b3 = init_actor_params(k_params, n_input, n_features, n_output)
    packed = pack_actor_params(w1, b1, w2, b2, w3, b3)

    # state as produced upstream: [B, 1, n_input]
    state = jax.random.normal(k_state, (batch, 1, n_input), dtype=jnp.float32)

    a = actor_forward(state, *packed, n_output=n_output)
    jax.block_until_ready(a)

    # Reference in plain JAX (torch-layout weights: y = x @ W.T + b).
    x = jnp.squeeze(state, axis=1).astype(jnp.float32)
    f1 = jnp.maximum(x @ w1.T + b1[None, :], 0.0)
    f2 = jnp.maximum(f1 @ w2.T + b2[None, :], 0.0)
    ref = f2 @ w3.T + b3[None, :]

    assert a.shape == (batch, n_output)
    assert jnp.allclose(a, ref, atol=1e-5, rtol=1e-5)

    print("KERNEL_OK")
</pallas_src>

<mosaic_0001>
module attributes {stable_mosaic.version = 11 : i64} {
  func.func @_actor_kernel(%arg0: i32, %arg1: memref<4x8xf32, #tpu.memory_space<vmem>>, %arg2: memref<32x5xf32, #tpu.memory_space<vmem>>, %arg3: memref<32x33xf32, #tpu.memory_space<vmem>>, %arg4: memref<8x33xf32, #tpu.memory_space<vmem>>, %arg5: memref<8x8xf32, #tpu.memory_space<vmem>>) attributes {dimension_semantics = [#tpu.dimension_semantics<parallel>], iteration_bounds = array<i64: 1>, scalar_prefetch = 0 : i64, scratch_operands = 0 : i64, tpu.core_type = #tpu.core_type<tc>, window_params = [{transform_indices = @transform_0, window_bounds = array<i64: 4, 8>}, {pipeline_mode = #tpu.pipeline_mode<synchronous>, transform_indices = @transform_1, window_bounds = array<i64: 32, 5>}, {pipeline_mode = #tpu.pipeline_mode<synchronous>, transform_indices = @transform_2, window_bounds = array<i64: 32, 33>}, {pipeline_mode = #tpu.pipeline_mode<synchronous>, transform_indices = @transform_3, window_bounds = array<i64: 8, 33>}, {transform_indices = @transform_4, window_bounds = array<i64: 8, 8>}]} {
    %c0 = arith.constant 0 : index
    %c0_0 = arith.constant 0 : index
    %0 = vector.load %arg1[%c0, %c0_0] : memref<4x8xf32, #tpu.memory_space<vmem>>, vector<4x8xf32>
    %c0_1 = arith.constant 0 : index
    %c0_2 = arith.constant 0 : index
    %1 = vector.load %arg2[%c0_1, %c0_2] : memref<32x5xf32, #tpu.memory_space<vmem>>, vector<32x5xf32>
    %2 = vector.extract_strided_slice %1 {offsets = [0, 4], sizes = [32, 1], strides = [1, 1]} : vector<32x5xf32> to vector<32x1xf32>
    %3 = vector.extract_strided_slice %1 {offsets = [0, 0], sizes = [32, 1], strides = [1, 1]} : vector<32x5xf32> to vector<32x1xf32>
    %4 = vector.extract_strided_slice %0 {offsets = [0, 0], sizes = [1, 8], strides = [1, 1]} : vector<4x8xf32> to vector<1x8xf32>
    %5 = vector.broadcast %3 : vector<32x1xf32> to vector<32x8xf32>
    %6 = vector.broadcast %4 : vector<1x8xf32> to vector<32x8xf32>
    %7 = arith.mulf %5, %6 : vector<32x8xf32>
    %8 = vector.extract_strided_slice %1 {offsets = [0, 1], sizes = [32, 1], strides = [1, 1]} : vector<32x5xf32> to vector<32x1xf32>
    %9 = vector.extract_strided_slice %0 {offsets = [1, 0], sizes = [1, 8], strides = [1, 1]} : vector<4x8xf32> to vector<1x8xf32>
    %10 = vector.broadcast %8 : vector<32x1xf32> to vector<32x8xf32>
    %11 = vector.broadcast %9 : vector<1x8xf32> to vector<32x8xf32>
    %12 = arith.mulf %10, %11 : vector<32x8xf32>
    %13 = arith.addf %7, %12 : vector<32x8xf32>
    %14 = vector.extract_strided_slice %1 {offsets = [0, 2], sizes = [32, 1], strides = [1, 1]} : vector<32x5xf32> to vector<32x1xf32>
    %15 = vector.extract_strided_slice %0 {offsets = [2, 0], sizes = [1, 8], strides = [1, 1]} : vector<4x8xf32> to vector<1x8xf32>
    %16 = vector.broadcast %14 : vector<32x1xf32> to vector<32x8xf32>
    %17 = vector.broadcast %15 : vector<1x8xf32> to vector<32x8xf32>
    %18 = arith.mulf %16, %17 : vector<32x8xf32>
    %19 = vector.extract_strided_slice %1 {offsets = [0, 3], sizes = [32, 1], strides = [1, 1]} : vector<32x5xf32> to vector<32x1xf32>
    %20 = vector.extract_strided_slice %0 {offsets = [3, 0], sizes = [1, 8], strides = [1, 1]} : vector<4x8xf32> to vector<1x8xf32>
    %21 = vector.broadcast %19 : vector<32x1xf32> to vector<32x8xf32>
    %22 = vector.broadcast %20 : vector<1x8xf32> to vector<32x8xf32>
    %23 = arith.mulf %21, %22 : vector<32x8xf32>
    %24 = arith.addf %18, %23 : vector<32x8xf32>
    %25 = arith.addf %13, %24 : vector<32x8xf32>
    %26 = vector.broadcast %2 : vector<32x1xf32> to vector<32x8xf32>
    %27 = arith.addf %25, %26 : vector<32x8xf32>
    %cst = arith.constant 0.000000e+00 : f32
    %28 = vector.broadcast %cst : f32 to vector<32x8xf32>
    %29 = arith.maximumf %27, %28 : vector<32x8xf32>
    %c0_3 = arith.constant 0 : index
    %c0_4 = arith.constant 0 : index
    %30 = vector.load %arg3[%c0_3, %c0_4] : memref<32x33xf32, #tpu.memory_space<vmem>>, vector<32x32xf32>
    %cst_5 = arith.constant dense<0.000000e+00> : vector<32x8xf32>
    %31 = tpu.matmul %30, %29, %cst_5 {dimension_numbers = #tpu.dot_dimension_numbers<[1], [0], [0], [1], [0, 0, 1, 1], [], []>} : vector<32x32xf32>, vector<32x8xf32>, vector<32x8xf32> -> vector<32x8xf32>
    %c0_6 = arith.constant 0 : index
    %c32 = arith.constant 32 : index
    %32 = vector.load %arg3[%c0_6, %c32] : memref<32x33xf32, #tpu.memory_space<vmem>>, vector<32x1xf32>
    %33 = vector.broadcast %32 : vector<32x1xf32> to vector<32x8xf32>
    %34 = arith.addf %31, %33 : vector<32x8xf32>
    %cst_7 = arith.constant 0.000000e+00 : f32
    %35 = vector.broadcast %cst_7 : f32 to vector<32x8xf32>
    %36 = arith.maximumf %34, %35 : vector<32x8xf32>
    %c0_8 = arith.constant 0 : index
    %c0_9 = arith.constant 0 : index
    %37 = vector.load %arg4[%c0_8, %c0_9] : memref<8x33xf32, #tpu.memory_space<vmem>>, vector<8x32xf32>
    %cst_10 = arith.constant dense<0.000000e+00> : vector<8x8xf32>
    %38 = tpu.matmul %37, %36, %cst_10 {dimension_numbers = #tpu.dot_dimension_numbers<[1], [0], [0], [1], [0, 0, 1, 1], [], []>} : vector<8x32xf32>, vector<32x8xf32>, vector<8x8xf32> -> vector<8x8xf32>
    %c0_11 = arith.constant 0 : index
    %c32_12 = arith.constant 32 : index
    %39 = vector.load %arg4[%c0_11, %c32_12] : memref<8x33xf32, #tpu.memory_space<vmem>>, vector<8x1xf32>
    %40 = vector.broadcast %39 : vector<8x1xf32> to vector<8x8xf32>
    %41 = arith.addf %38, %40 : vector<8x8xf32>
    %c0_13 = arith.constant 0 : index
    %c0_14 = arith.constant 0 : index
    %42 = vector.load %arg5[%c0_13, %c0_14] : memref<8x8xf32, #tpu.memory_space<vmem>>, vector<8x8xf32>
    tpu.vector_store %arg5[%c0_13, %c0_14], %41 {strides = array<i32>} : memref<8x8xf32, #tpu.memory_space<vmem>>, vector<8x8xf32>,
    return
  }
  func.func @transform_0(%arg0: i32) -> (i32, i32) {
    %c0_i32 = arith.constant 0 : i32
    %c0_i32_0 = arith.constant 0 : i32
    return %c0_i32, %arg0 : i32, i32
  }
  func.func @transform_1(%arg0: i32) -> (i32, i32) {
    %c0_i32 = arith.constant 0 : i32
    %c0_i32_0 = arith.constant 0 : i32
    %c0_i32_1 = arith.constant 0 : i32
    return %c0_i32, %c0_i32_0 : i32, i32
  }
  func.func @transform_2(%arg0: i32) -> (i32, i32) {
    %c0_i32 = arith.constant 0 : i32
    %c0_i32_0 = arith.constant 0 : i32
    %c0_i32_1 = arith.constant 0 : i32
    return %c0_i32, %c0_i32_0 : i32, i32
  }
  func.func @transform_3(%arg0: i32) -> (i32, i32) {
    %c0_i32 = arith.constant 0 : i32
    %c0_i32_0 = arith.constant 0 : i32
    %c0_i32_1 = arith.constant 0 : i32
    return %c0_i32, %c0_i32_0 : i32, i32
  }
  func.func @transform_4(%arg0: i32) -> (i32, i32) {
    %c0_i32 = arith.constant 0 : i32
    %c0_i32_0 = arith.constant 0 : i32
    return %c0_i32, %arg0 : i32, i32
  }
}

</mosaic_0001>

<llo_original>
// kernel: actor_forward.1
$region0: #{actor_forward.1}
  #allocation0 [shape = 'u32[]', space=smem, size = 0x4, offset = 0x4, fixed_abs, tag = 'smem constant byte address 0x4 - core index']
  #allocation1 [shape = 'u32[144,128]{1,0:T(1,128)}', space=vmem, size = 0x12000, scoped, tag = 'internal scratch']
  %s0 = inlined_call_operand.vmem [shape: f32[4,8], index: 0, kind: input, shape index: {}]
  %s1 = inlined_call_operand.vmem [shape: f32[32,5], index: 1, kind: input, shape index: {}]
  %s2 = inlined_call_operand.vmem [shape: f32[32,33], index: 2, kind: input, shape index: {}]
  %s3 = inlined_call_operand.vmem [shape: f32[8,33], index: 3, kind: input, shape index: {}]
  %s4 = inlined_call_operand.vmem [shape: f32[8,8], index: 4, kind: output, shape index: {}]
  %s5 = sld [smem:[#allocation0]]
  $region26: #{actor_forward.1} parent=0
    _
  %s7 = ssub.s32 1, %s5
  %s8 = scalar_select 0, %s7, %s5
  // Predicated region
  $region2: #{actor_forward.1} parent=0 // pred_check
    _
  $region3: #{actor_forward.1} parent=0 // pred_check_branch
    %10 = sbr.rel (0) target = $region5
  $region4: #{actor_forward.1} parent=0 // pred_region
    _
  $region5: #{actor_forward.1} parent=0 // pred_fallthru
    _
  // Predicated region
  $region6: #{actor_forward.1} parent=0 // pred_check
    _
  $region7: #{actor_forward.1} parent=0 // pred_check_branch
    %12 = sbr.rel (0) target = $region9
  $region8: #{actor_forward.1} parent=0 // pred_region
    _
  $region9: #{actor_forward.1} parent=0 // pred_fallthru
    _
  // Predicated region
  $region10: #{actor_forward.1} parent=0 // pred_check
    _
  $region11: #{actor_forward.1} parent=0 // pred_check_branch
    %14 = sbr.rel (0) target = $region13
  $region12: #{actor_forward.1} parent=0 // pred_region
    _
  $region13: #{actor_forward.1} parent=0 // pred_fallthru
    _
  // Predicated region
  $region14: #{actor_forward.1} parent=0 // pred_check
    _
  $region15: #{actor_forward.1} parent=0 // pred_check_branch
    %16 = sbr.rel (0) target = $region17
  $region16: #{actor_forward.1} parent=0 // pred_region
    _
  $region17: #{actor_forward.1} parent=0 // pred_fallthru
    _
  %v17 = vld [vmem:[%s0] sm:$0xf]
  %v18 = vld [vmem:[%s1] sm:$0xff]
  %v19 = vld [vmem:[%s1 + $0x8] sm:$0xff]
  %v20 = vld [vmem:[%s1 + $0x10] sm:$0xff]
  %v21 = vld [vmem:[%s1 + $0x18] sm:$0xff]
  %23 = vset.pattern.permute.xlu0 0
  %24 = vperm.xlu0 %23, %v18
  %v25 = vpop.permute.xlu0 %24
  %28 = vset.pattern.permute.xlu0 0
  %29 = vperm.xlu0 %28, %v19
  %v30 = vpop.permute.xlu0 %29
  %33 = vset.pattern.permute.xlu0 0
  %34 = vperm.xlu0 %33, %v20
  %v35 = vpop.permute.xlu0 %34
  %38 = vset.pattern.permute.xlu0 0
  %39 = vperm.xlu0 %38, %v21
  %v40 = vpop.permute.xlu0 %39
  %v42 = vlaneseq
  %v43 = vshrl.u32 %v42, 7
  %v44 = vsub.s32 0, %v43
  %v45 = vrot.slane %v17, %v44
  %v46 = vmul.f32 %v25, %v45
  %v47 = vmul.f32 %v30, %v45
  %v48 = vmul.f32 %v35, %v45
  %v49 = vmul.f32 %v40, %v45
  %50 = vset.pattern.permute.xlu0 1
  %51 = vperm.xlu0 %50, %v18
  %v52 = vpop.permute.xlu0 %51
  %54 = vset.pattern.permute.xlu0 1
  %55 = vperm.xlu0 %54, %v19
  %v56 = vpop.permute.xlu0 %55
  %58 = vset.pattern.permute.xlu0 1
  %59 = vperm.xlu0 %58, %v20
  %v60 = vpop.permute.xlu0 %59
  %62 = vset.pattern.permute.xlu0 1
  %63 = vperm.xlu0 %62, %v21
  %v64 = vpop.permute.xlu0 %63
  %v66 = vlaneseq
  %v67 = vshrl.u32 %v66, 7
  %v68 = vsub.s32 1, %v67
  %v69 = vrot.slane %v17, %v68
  %v70 = vmul.f32 %v52, %v69
  %v71 = vmul.f32 %v56, %v69
  %v72 = vmul.f32 %v60, %v69
  %v73 = vmul.f32 %v64, %v69
  %v74 = vadd.f32 %v46, %v70
  %v75 = vadd.f32 %v47, %v71
  %v76 = vadd.f32 %v48, %v72
  %v77 = vadd.f32 %v49, %v73
  %78 = vset.pattern.permute.xlu0 2
  %79 = vperm.xlu0 %78, %v18
  %v80 = vpop.permute.xlu0 %79
  %82 = vset.pattern.permute.xlu0 2
  %83 = vperm.xlu0 %82, %v19
  %v84 = vpop.permute.xlu0 %83
  %86 = vset.pattern.permute.xlu0 2
  %87 = vperm.xlu0 %86, %v20
  %v88 = vpop.permute.xlu0 %87
  %90 = vset.pattern.permute.xlu0 2
  %91 = vperm.xlu0 %90, %v21
  %v92 = vpop.permute.xlu0 %91
  %v94 = vlaneseq
  %v95 = vshrl.u32 %v94, 7
  %v96 = vsub.s32 2, %v95
  %v97 = vrot.slane %v17, %v96
  %v98 = vmul.f32 %v80, %v97
  %v99 = vmul.f32 %v84, %v97
  %v100 = vmul.f32 %v88, %v97
  %v101 = vmul.f32 %v92, %v97
  %102 = vset.pattern.permute.xlu0 3
  %103 = vperm.xlu0 %102, %v18
  %v104 = vpop.permute.xlu0 %103
  %106 = vset.pattern.permute.xlu0 3
  %107 = vperm.xlu0 %106, %v19
  %v108 = vpop.permute.xlu0 %107
  %110 = vset.pattern.permute.xlu0 3
  %111 = vperm.xlu0 %110, %v20
  %v112 = vpop.permute.xlu0 %111
  %114 = vset.pattern.permute.xlu0 3
  %115 = vperm.xlu0 %114, %v21
  %v116 = vpop.permute.xlu0 %115
  %v118 = vlaneseq
  %v119 = vshrl.u32 %v118, 7
  %v120 = vsub.s32 3, %v119
  %v121 = vrot.slane %v17, %v120
  %v122 = vmul.f32 %v104, %v121
  %v123 = vmul.f32 %v108, %v121
  %v124 = vmul.f32 %v112, %v121
  %v125 = vmul.f32 %v116, %v121
  %v126 = vadd.f32 %v98, %v122
  %v127 = vadd.f32 %v99, %v123
  %v128 = vadd.f32 %v100, %v124
  %v129 = vadd.f32 %v101, %v125
  %v130 = vadd.f32 %v74, %v126
  %v131 = vadd.f32 %v75, %v127
  %v132 = vadd.f32 %v76, %v128
  %v133 = vadd.f32 %v77, %v129
  %134 = vset.pattern.permute.xlu0 4
  %135 = vperm.xlu0 %134, %v18
  %v136 = vpop.permute.xlu0 %135
  %138 = vset.pattern.permute.xlu0 4
  %139 = vperm.xlu0 %138, %v19
  %v140 = vpop.permute.xlu0 %139
  %142 = vset.pattern.permute.xlu0 4
  %143 = vperm.xlu0 %142, %v20
  %v144 = vpop.permute.xlu0 %143
  %146 = vset.pattern.permute.xlu0 4
  %147 = vperm.xlu0 %146, %v21
  %v148 = vpop.permute.xlu0 %147
  %v150 = vadd.f32 %v130, %v136
  %v151 = vadd.f32 %v131, %v140
  %v152 = vadd.f32 %v132, %v144
  %v153 = vadd.f32 %v133, %v148
  %v154 = vmax.f32 %v150, 0.0
  %v155 = vmax.f32 %v151, 0.0
  %v156 = vmax.f32 %v152, 0.0
  %v157 = vmax.f32 %v153, 0.0
  %v158 = vld [vmem:[%s2] sm:$0xff]
  %v159 = vld [vmem:[%s2 + $0x8] sm:$0xff]
  %v160 = vld [vmem:[%s2 + $0x10] sm:$0xff]
  %v161 = vld [vmem:[%s2 + $0x18] sm:$0xff]
  %163 = vset.pattern.permute.xlu0 32
  %164 = vperm.xlu0 %163, %v158
  %v165 = vpop.permute.xlu0 %164
  %168 = vset.pattern.permute.xlu0 32
  %169 = vperm.xlu0 %168, %v159
  %v170 = vpop.permute.xlu0 %169
  %173 = vset.pattern.permute.xlu0 32
  %174 = vperm.xlu0 %173, %v160
  %v175 = vpop.permute.xlu0 %174
  %178 = vset.pattern.permute.xlu0 32
  %179 = vperm.xlu0 %178, %v161
  %v180 = vpop.permute.xlu0 %179
  %vm182 = vcmask 261120
  %v183 = vsel %vm182, %v158, 0
  %v185 = vsel %vm182, %v159, 0
  %v187 = vsel %vm182, %v160, 0
  %v189 = vsel %vm182, %v161, 0
  %191 = vmatprep.subr.mxu0 0.0
  %192 = vmatpush1.msra.mxu0 %v154
  %193 = vmatprep.subr.mxu0 0.0
  %194 = vmatpush1.msra.mxu0 %v155
  %195 = vmatprep.subr.mxu0 0.0
  %196 = vmatpush1.msra.mxu0 %v156
  %197 = vmatprep.subr.mxu0 0.0
  %198 = vmatpush1.msra.mxu0 %v157
  %199 = vmatprep.subr.mxu0 0.0
  %200 = vmatpush1.msra.mxu0 0.0
  %201 = vmatprep.subr.mxu0 0.0
  %202 = vmatpush1.msra.mxu0 0.0
  %203 = vmatprep.subr.mxu0 0.0
  %204 = vmatpush1.msra.mxu0 0.0
  %205 = vmatprep.subr.mxu0 0.0
  %206 = vmatpush1.msra.mxu0 0.0
  %207 = vmatprep.subr.mxu0 0.0
  %208 = vmatpush1.msra.mxu0 0.0
  %209 = vmatprep.subr.mxu0 0.0
  %210 = vmatpush1.msra.mxu0 0.0
  %211 = vmatprep.subr.mxu0 0.0
  %212 = vmatpush1.msra.mxu0 0.0
  %213 = vmatprep.subr.mxu0 0.0
  %214 = vmatpush1.msra.mxu0 0.0
  %215 = vmatprep.subr.mxu0 0.0
  %216 = vmatpush1.msra.mxu0 0.0
  %217 = vmatprep.subr.mxu0 0.0
  %218 = vmatpush1.msra.mxu0 0.0
  %219 = vmatprep.subr.mxu0 0.0
  %220 = vmatpush1.msra.mxu0 0.0
  %221 = vmatprep.subr.mxu0 0.0
  %222 = vmatpush1.msra.mxu0 0.0
  %223 = vmatprep.subr.mxu0 0.0
  %224 = vmatpush1.msra.mxu0 0.0
  %225 = vmatprep.subr.mxu0 0.0
  %226 = vmatpush1.msra.mxu0 0.0
  %227 = vmatprep.subr.mxu0 0.0
  %228 = vmatpush1.msra.mxu0 0.0
  %229 = vmatprep.subr.mxu0 0.0
  %230 = vmatpush1.msra.mxu0 0.0
  %231 = vmatprep.subr.mxu0 0.0
  %232 = vmatpush1.msra.mxu0 0.0
  %233 = vmatprep.subr.mxu0 0.0
  %234 = vmatpush1.msra.mxu0 0.0
  %235 = vmatprep.subr.mxu0 0.0
  %236 = vmatpush1.msra.mxu0 0.0
  %237 = vmatprep.subr.mxu0 0.0
  %238 = vmatpush1.msra.mxu0 0.0
  %239 = vmatprep.subr.mxu0 0.0
  %240 = vmatpush1.msra.mxu0 0.0
  %241 = vmatprep.subr.mxu0 0.0
  %242 = vmatpush1.msra.mxu0 0.0
  %243 = vmatprep.subr.mxu0 0.0
  %244 = vmatpush1.msra.mxu0 0.0
  %245 = vmatprep.subr.mxu0 0.0
  %246 = vmatpush1.msra.mxu0 0.0
  %247 = vmatprep.subr.mxu0 0.0
  %248 = vmatpush1.msra.mxu0 0.0
  %249 = vmatprep.subr.mxu0 0.0
  %250 = vmatpush1.msra.mxu0 0.0
  %251 = vmatprep.subr.mxu0 0.0
  %252 = vmatpush1.msra.mxu0 0.0
  %253 = vmatprep.subr.mxu0 0.0
  %254 = vmatpush1.msra.mxu0 0.0
  %255 = vmatprep.mubr.f32.mxu0 0.0
  %256 = vmatmul.mubr.f32.gmra.mrb[0].mxu0 %v183
  %v257 = vpop.f32.mrb[0].mxu0
  %v258 = vadd.f32 %v165, %v257
  %v259 = vpop.f32.mrb[0].mxu0
  %260 = vmatprep.mubr.f32.mxu0 0.0
  %261 = vmatmul.mubr.f32.gmra.mrb[0].mxu0 %v185
  %v262 = vpop.f32.mrb[0].mxu0
  %v263 = vadd.f32 %v170, %v262
  %v264 = vpop.f32.mrb[0].mxu0
  %265 = vmatprep.mubr.f32.mxu0 0.0
  %266 = vmatmul.mubr.f32.gmra.mrb[0].mxu0 %v187
  %v267 = vpop.f32.mrb[0].mxu0
  %v268 = vadd.f32 %v175, %v267
  %v269 = vpop.f32.mrb[0].mxu0
  %270 = vmatprep.mubr.f32.mxu0 0.0
  %271 = vmatmul.mubr.f32.gmra.mrb[0].mxu0 %v189
  %v272 = vpop.f32.mrb[0].mxu0
  %v273 = vadd.f32 %v180, %v272
  %v274 = vpop.f32.mrb[0].mxu0
  %275 = vdwg.mxu0
  %v276 = vmax.f32 %v258, 0.0
  %v277 = vmax.f32 %v263, 0.0
  %v278 = vmax.f32 %v268, 0.0
  %v279 = vmax.f32 %v273, 0.0
  %v280 = vld [vmem:[%s3] sm:$0xff]
  %282 = vset.pattern.permute.xlu0 32
  %283 = vperm.xlu0 %282, %v280
  %v284 = vpop.permute.xlu0 %283
  %v286 = vsel %vm182, %v280, 0
  %288 = vmatprep.subr.mxu0 0.0
  %289 = vmatpush1.msra.mxu0 %v276
  %290 = vmatprep.subr.mxu0 0.0
  %291 = vmatpush1.msra.mxu0 %v277
  %292 = vmatprep.subr.mxu0 0.0
  %293 = vmatpush1.msra.mxu0 %v278
  %294 = vmatprep.subr.mxu0 0.0
  %295 = vmatpush1.msra.mxu0 %v279
  %296 = vmatprep.subr.mxu0 0.0
  %297 = vmatpush1.msra.mxu0 0.0
  %298 = vmatprep.subr.mxu0 0.0
  %299 = vmatpush1.msra.mxu0 0.0
  %300 = vmatprep.subr.mxu0 0.0
  %301 = vmatpush1.msra.mxu0 0.0
  %302 = vmatprep.subr.mxu0 0.0
  %303 = vmatpush1.msra.mxu0 0.0
  %304 = vmatprep.subr.mxu0 0.0
  %305 = vmatpush1.msra.mxu0 0.0
  %306 = vmatprep.subr.mxu0 0.0
  %307 = vmatpush1.msra.mxu0 0.0
  %308 = vmatprep.subr.mxu0 0.0
  %309 = vmatpush1.msra.mxu0 0.0
  %310 = vmatprep.subr.mxu0 0.0
  %311 = vmatpush1.msra.mxu0 0.0
  %312 = vmatprep.subr.mxu0 0.0
  %313 = vmatpush1.msra.mxu0 0.0
  %314 = vmatprep.subr.mxu0 0.0
  %315 = vmatpush1.msra.mxu0 0.0
  %316 = vmatprep.subr.mxu0 0.0
  %317 = vmatpush1.msra.mxu0 0.0
  %318 = vmatprep.subr.mxu0 0.0
  %319 = vmatpush1.msra.mxu0 0.0
  %320 = vmatprep.subr.mxu0 0.0
  %321 = vmatpush1.msra.mxu0 0.0
  %322 = vmatprep.subr.mxu0 0.0
  %323 = vmatpush1.msra.mxu0 0.0
  %324 = vmatprep.subr.mxu0 0.0
  %325 = vmatpush1.msra.mxu0 0.0
  %326 = vmatprep.subr.mxu0 0.0
  %327 = vmatpush1.msra.mxu0 0.0
  %328 = vmatprep.subr.mxu0 0.0
  %329 = vmatpush1.msra.mxu0 0.0
  %330 = vmatprep.subr.mxu0 0.0
  %331 = vmatpush1.msra.mxu0 0.0
  %332 = vmatprep.subr.mxu0 0.0
  %333 = vmatpush1.msra.mxu0 0.0
  %334 = vmatprep.subr.mxu0 0.0
  %335 = vmatpush1.msra.mxu0 0.0
  %336 = vmatprep.subr.mxu0 0.0
  %337 = vmatpush1.msra.mxu0 0.0
  %338 = vmatprep.subr.mxu0 0.0
  %339 = vmatpush1.msra.mxu0 0.0
  %340 = vmatprep.subr.mxu0 0.0
  %341 = vmatpush1.msra.mxu0 0.0
  %342 = vmatprep.subr.mxu0 0.0
  %343 = vmatpush1.msra.mxu0 0.0
  %344 = vmatprep.subr.mxu0 0.0
  %345 = vmatpush1.msra.mxu0 0.0
  %346 = vmatprep.subr.mxu0 0.0
  %347 = vmatpush1.msra.mxu0 0.0
  %348 = vmatprep.subr.mxu0 0.0
  %349 = vmatpush1.msra.mxu0 0.0
  %350 = vmatprep.subr.mxu0 0.0
  %351 = vmatpush1.msra.mxu0 0.0
  %352 = vmatprep.mubr.f32.mxu0 0.0
  %353 = vmatmul.mubr.f32.gmra.mrb[0].mxu0 %v286
  %v354 = vpop.f32.mrb[0].mxu0
  %v355 = vadd.f32 %v284, %v354
  %v356 = vpop.f32.mrb[0].mxu0
  %357 = vdwg.mxu0
  %vm358 = vcmask 64512
  %359 = vst.msk [vmem:[%s4] sm:$0xff] %vm358, %v355
  // Predicated region
  $region18: #{actor_forward.1} parent=0 // pred_check
    _
  $region19: #{actor_forward.1} parent=0 // pred_check_branch
    %361 = sbr.rel (0) target = $region21
  $region20: #{actor_forward.1} parent=0 // pred_region
    _
  $region21: #{actor_forward.1} parent=0 // pred_fallthru
    _
  // Predicated region
  $region22: #{actor_forward.1} parent=0 // pred_check
    _
  $region23: #{actor_forward.1} parent=0 // pred_check_branch
    %363 = sbr.rel (0) target = $region25
  $region24: #{actor_forward.1} parent=0 // pred_region
    _
  $region25: #{actor_forward.1} parent=0 // pred_fallthru
    _

</llo_original>
